<compile_context>
chip_gen: v5e
topology: v5e:2x2
jax: 0.10.0
libtpu: 0.0.40
codegen_flags: <defaults>
</compile_context>

<pallas_src>
import math

import jax
import jax.numpy as jnp
from jax import lax
from jax.experimental import pallas as pl
from jax.experimental.pallas import tpu as pltpu


# ----------------------------------------------------------------------------
# Tiling / budget helpers
# ----------------------------------------------------------------------------
_LANE = 128

# Per-generation scoped-VMEM budget: ~75% of physical VMEM, capped at 96 MiB.
# (v5e/v6e: 128 MiB physical -> 96 MiB budget; v7x: 64 MiB physical -> 48 MiB budget.)
try:
    _VMEM_CAP = int(pltpu.get_tpu_info().vmem_capacity_bytes)
except Exception:  # pragma: no cover - conservative fallback (v7x-sized)
    _VMEM_CAP = 64 * 1024 * 1024
_VMEM_LIMIT_BYTES = int(min(_VMEM_CAP * 3 // 4, 96 * 1024 * 1024))

# Resident / per-step weight tile budget (kept small so double-buffering of the
# block never threatens v7x's 64 MiB VMEM).
_W_TILE_BUDGET_BYTES = 8 * 1024 * 1024


def _round_up(x, m):
    return ((x + m - 1) // m) * m


def _choose_tiles(m, k):
    """Pick (tm, tk, m_pad, k_pad) for an f32 A of shape [m, k].

    Single K step (tk == k_pad) whenever the whole reduction depth fits a
    reasonable f32 A tile (K_pad <= 2048), so every A byte is read exactly once
    and there is no reduction-axis epilogue.  tm stays at 128 unless M is large
    enough (>= 2048) that tm=256 still leaves >= 4 blocks per v7x TensorCore.
    """
    k_pad = _round_up(k, _LANE)
    if k_pad <= 2048:
        tk = k_pad
    else:
        tk = 1024
        k_pad = _round_up(k_pad, tk)
    tm = 256 if m >= 2048 else 128
    m_pad = _round_up(m, tm)
    return tm, tk, m_pad, k_pad


def _pad_f32(x, rows, cols):
    """Zero-pad to (rows, cols) f32.  Fast path: aligned f32 inputs pass through
    untouched (no extra HBM read+write of the operand)."""
    m, k = x.shape
    if (m, k) == (rows, cols) and x.dtype == jnp.float32:
        return x
    return jnp.zeros((rows, cols), jnp.float32).at[:m, :k].set(x.astype(jnp.float32))


# ----------------------------------------------------------------------------
# Matmul kernels: out = A @ W  (f32 operands, f32 MXU accumulation)
# ----------------------------------------------------------------------------
def _matmul_single_k_kernel(a_ref, w_ref, o_ref):
    # Grid = (M tiles,).  W's block index is constant, so it is DMA'd into VMEM
    # once per core and stays resident; A tiles stream through.
    # (pipeline_mode=pl.Buffered(1) could halve the resident-W footprint; left at
    #  the default since W is asserted <= 8 MiB in the wrapper.)
    o_ref[...] = jnp.dot(a_ref[...], w_ref[...], preferred_element_type=jnp.float32)


def _matmul_multi_k_kernel(a_ref, w_ref, o_ref):
    # Grid = (M tiles, K tiles).  The output block index (i, 0) is constant along
    # the kk axis, so o_ref stays resident in VMEM across the reduction: accumulate
    # directly into it — no scratch accumulator, no zero-init pass, no final cast.
    part = jnp.dot(a_ref[...], w_ref[...], preferred_element_type=jnp.float32)

    @pl.when(pl.program_id(1) == 0)
    def _():
        o_ref[...] = part

    @pl.when(pl.program_id(1) > 0)
    def _():
        o_ref[...] += part


@jax.jit
def pallas_gcn_matmul(a, w):
    """out = a @ w in f32.  A streamed in (tm, tk) tiles; W resident (single-K path)
    or streamed as small (tk, h_pad) tiles (multi-K path)."""
    m, k = a.shape
    k2, h = w.shape
    assert k == k2, "inner dimensions must match"

    tm, tk, m_pad, k_pad = _choose_tiles(m, k)
    h_pad = max(_LANE, _round_up(h, _LANE))  # lane-dense output (no masked vst.msk)

    # GCN weight matrices are small; the resident / per-step W tile must fit comfortably.
    # TODO(synk): add an N-tiled fallback kernel for weight tiles larger than the budget.
    assert tk * h_pad * 4 <= _W_TILE_BUDGET_BYTES, "weight tile too large for this kernel"

    a_p = _pad_f32(a, m_pad, k_pad)
    w_p = _pad_f32(w, k_pad, h_pad)

    cost = pl.CostEstimate(
        flops=int(2 * m_pad * k_pad * h_pad),
        transcendentals=0,
        bytes_accessed=int((m_pad * k_pad + k_pad * h_pad + m_pad * h_pad) * 4),
    )

    if tk == k_pad:
        # Common case: one K step -> 1-D parallel grid, no reduction bookkeeping.
        out = pl.pallas_call(
            _matmul_single_k_kernel,
            out_shape=jax.ShapeDtypeStruct((m_pad, h_pad), jnp.float32),
            grid_spec=pltpu.PrefetchScalarGridSpec(
                num_scalar_prefetch=0,
                grid=(m_pad // tm,),
                in_specs=[
                    pl.BlockSpec((tm, k_pad), lambda i: (i, 0)),      # streamed A tiles
                    pl.BlockSpec((k_pad, h_pad), lambda i: (0, 0)),   # W resident: 1 DMA/core
                ],
                out_specs=pl.BlockSpec((tm, h_pad), lambda i: (i, 0)),
            ),
            compiler_params=pltpu.CompilerParams(
                dimension_semantics=("parallel",),
                vmem_limit_bytes=_VMEM_LIMIT_BYTES,
            ),
            cost_estimate=cost,
        )(a_p, w_p)
    else:
        out = pl.pallas_call(
            _matmul_multi_k_kernel,
            out_shape=jax.ShapeDtypeStruct((m_pad, h_pad), jnp.float32),
            grid_spec=pltpu.PrefetchScalarGridSpec(
                num_scalar_prefetch=0,
                grid=(m_pad // tm, k_pad // tk),
                in_specs=[
                    pl.BlockSpec((tm, tk), lambda i, kk: (i, kk)),     # streamed A tiles
                    pl.BlockSpec((tk, h_pad), lambda i, kk: (kk, 0)),  # small W tiles keyed on kk
                ],
                out_specs=pl.BlockSpec((tm, h_pad), lambda i, kk: (i, 0)),
            ),
            compiler_params=pltpu.CompilerParams(
                dimension_semantics=("parallel", "arbitrary"),
                vmem_limit_bytes=_VMEM_LIMIT_BYTES,
            ),
            cost_estimate=cost,
        )(a_p, w_p)

    return out[:m, :h]


def pallas_gcn_fused_matmul(a, x, w):
    """featureless=False path: (A @ X) @ W re-associated to A @ (X @ W).

    The tiny [K, H] product Y = X @ W is computed first (one small Pallas matmul),
    then A is streamed against the small resident Y — fewer FLOPs whenever D > H,
    no re-streaming of X, and no large f32 intermediate in VMEM or HBM."""
    y = pallas_gcn_matmul(x, w)     # [K, H], tiny
    return pallas_gcn_matmul(a, y)  # [M, H]


# ----------------------------------------------------------------------------
# Parameters (matching the PyTorch module's submodules)
# ----------------------------------------------------------------------------
def xavier_uniform(key, shape, gain=1.0, dtype=jnp.float32):
    fan_in, fan_out = shape
    bound = gain * math.sqrt(6.0 / (fan_in + fan_out))
    return jax.random.uniform(key, shape, dtype=dtype, minval=-bound, maxval=bound)


def init_params(key, input_dim, hidden_dim, kernel_num, filter_sizes=(1, 2, 3, 4)):
    keys = jax.random.split(key, 1 + 2 * len(filter_sizes) + 2)
    params = {"embedding": xavier_uniform(keys[0], (input_dim, hidden_dim), gain=1.0)}

    convs = []
    kw = hidden_dim * 2 + 10
    for i, fs in enumerate(filter_sizes):
        fan_in = 1 * fs * kw
        bound = 1.0 / math.sqrt(fan_in)
        w = jax.random.uniform(keys[1 + 2 * i], (kernel_num, 1, fs, kw),
                               minval=-bound, maxval=bound, dtype=jnp.float32)
        b = jax.random.uniform(keys[2 + 2 * i], (kernel_num,),
                               minval=-bound, maxval=bound, dtype=jnp.float32)
        convs.append((w, b))
    params["convs"] = tuple(convs)

    dense_in = kernel_num * len(filter_sizes) * 2
    bound = 1.0 / math.sqrt(dense_in)
    params["dense_w"] = jax.random.uniform(keys[-2], (2, dense_in),
                                           minval=-bound, maxval=bound, dtype=jnp.float32)
    params["dense_b"] = jax.random.uniform(keys[-1], (2,),
                                           minval=-bound, maxval=bound, dtype=jnp.float32)
    return params


# ----------------------------------------------------------------------------
# CNN encoder branch (Conv2d + ReLU + max-pool over height + dropout + ReLU)
# ----------------------------------------------------------------------------
def _cnn_branch(conv_params, feats):
    # feats: [L, 2*hidden]  (torch: unsqueeze(0).unsqueeze(1) -> NCHW [1, 1, L, 2*hidden])
    t = feats.astype(jnp.float32)[None, None, :, :]
    outs = []
    for w, b in conv_params:
        fm = lax.conv_general_dilated(
            t, w, window_strides=(1, 1), padding=((5, 5), (5, 5)),
            dimension_numbers=("NCHW", "OIHW", "NCHW"))
        fm = fm + b[None, :, None, None]
        fm = jax.nn.relu(fm)
        # F.max_pool2d(kernel=(k_h, 1)) over the full height; conv output width is 1.
        outs.append(jnp.max(fm, axis=(2, 3)))               # [1, kernel_num]
    enc = jnp.concatenate(outs, axis=1)                      # [1, kernel_num * n_filters]
    # TODO(synk): nn.Dropout(0.5) in training mode is stochastic; eval-mode identity here.
    return jax.nn.relu(enc)


# ----------------------------------------------------------------------------
# Full forward pass
# ----------------------------------------------------------------------------
def gcn_alignment_cnn_forward(params, adj, batch_x, batch_y, doc_att, att_words,
                              X=None, featureless=True):
    # --- GCN layer: the torch.mm hot path runs in Pallas ---
    if not featureless:
        # TODO(synk): nn.Dropout(0.5) on X in training mode is stochastic; identity here.
        layer1 = pallas_gcn_fused_matmul(adj, X, params["embedding"])   # A @ (X @ W)
    else:
        layer1 = pallas_gcn_matmul(adj, params["embedding"])            # A @ W, W resident

    # --- soft attention over ragged per-sample word sets (dict-driven gathers and
    #     tiny variable-length matmuls: kept in plain JAX, not MXU-shaped work) ---
    def _get_words_encoding(batch):
        coll = []
        for v in batch:
            atts = doc_att[str(int(v))]
            words_idx = []
            for att_idx in atts:
                if att_idx == -1:
                    continue
                words_idx.extend(att_words[str(att_idx)])
            idx = jnp.asarray(words_idx, dtype=jnp.int32)
            coll.append(jnp.take(layer1, idx, axis=0))
        return coll

    Q = _get_words_encoding(batch_x)
    A = _get_words_encoding(batch_y)

    predicts = []
    for i in range(len(batch_x)):
        q, a = Q[i], A[i]
        score = q @ a.T
        wq = jax.nn.softmax(score, axis=1)
        wa = jax.nn.softmax(score.T, axis=1)
        eq = wq @ a
        ea = wa @ q

        q_sub = q - eq
        a_sub = a - ea
        q_feat = _cnn_branch(params["convs"],
                             jnp.concatenate([q_sub * q_sub, q * eq], axis=1))
        a_feat = _cnn_branch(params["convs"],
                             jnp.concatenate([a_sub * a_sub, a * ea], axis=1))

        re = jnp.concatenate([q_feat, a_feat], axis=1)
        score_out = re @ params["dense_w"].T + params["dense_b"]
        # torch code computes F.relu(score) but discards the result -> not applied.
        predicts.append(jax.nn.log_softmax(score_out, axis=1))
    return jnp.concatenate(predicts, axis=0)


# ----------------------------------------------------------------------------
# Demo / self-test (small shapes, quick compiles)
# ----------------------------------------------------------------------------
if __name__ == "__main__":
    key = jax.random.PRNGKey(0)
    k_adj, k_params, k_a, k_b, k_c = jax.random.split(key, 5)

    input_dim = 256      # graph nodes (featureless GCN: adj is [N, N], N == input_dim)
    hidden_dim = 64
    kernel_num = 4
    filter_sizes = (1, 2, 3, 4)

    # Deterministic normalized adjacency  A_hat = D^-1 (A + I)
    raw = (jax.random.uniform(k_adj, (input_dim, input_dim)) > 0.95).astype(jnp.float32)
    adj = raw + jnp.eye(input_dim, dtype=jnp.float32)
    adj = adj / jnp.sum(adj, axis=1, keepdims=True)

    params = init_params(k_params, input_dim, hidden_dim, kernel_num, filter_sizes)

    # ---- check the resident-W Pallas matmul (featureless path, aligned fast path) ----
    layer1 = jax.block_until_ready(pallas_gcn_matmul(adj, params["embedding"]))
    ref = adj @ params["embedding"]
    rel = jnp.max(jnp.abs(layer1 - ref)) / (jnp.max(jnp.abs(ref)) + 1e-8)
    assert layer1.shape == (input_dim, hidden_dim)
    assert float(rel) < 1e-2, f"featureless kernel mismatch (rel err {float(rel):.5f})"

    # ---- check the padding path (non-128-aligned node / hidden counts) ----
    a_s = jax.random.normal(k_a, (120, 120), dtype=jnp.float32) * 0.05
    w_s = jax.random.normal(k_b, (120, 48), dtype=jnp.float32) * 0.05
    out_s = jax.block_until_ready(pallas_gcn_matmul(a_s, w_s))
    ref_s = a_s @ w_s
    rel_s = jnp.max(jnp.abs(out_s - ref_s)) / (jnp.max(jnp.abs(ref_s)) + 1e-8)
    assert out_s.shape == (120, 48)
    assert float(rel_s) < 1e-2, f"padded kernel mismatch (rel err {float(rel_s):.5f})"

    # ---- check the re-associated A @ (X @ W) path (featureless=False) ----
    ka1, ka2, ka3 = jax.random.split(k_c, 3)
    a_f = jax.random.normal(ka1, (144, 144), dtype=jnp.float32) * 0.05
    x_f = jax.random.normal(ka2, (144, 80), dtype=jnp.float32) * 0.05
    w_f = jax.random.normal(ka3, (80, 64), dtype=jnp.float32) * 0.05
    out_f = jax.block_until_ready(pallas_gcn_fused_matmul(a_f, x_f, w_f))
    ref_f = (a_f @ x_f) @ w_f
    rel_f = jnp.max(jnp.abs(out_f - ref_f)) / (jnp.max(jnp.abs(ref_f)) + 1e-8)
    assert out_f.shape == (144, 64)
    assert float(rel_f) < 1e-2, f"fused kernel mismatch (rel err {float(rel_f):.5f})"

    # ---- full forward pass (GCN -> soft attention -> CNN encoders -> dense -> log-softmax) ----
    att_words = {str(j): [int(v) for v in range(j * 7, j * 7 + 5 + (j % 3))] for j in range(8)}
    doc_att = {"0": [0, 1, -1], "1": [2, -1, 3], "2": [4, 5], "3": [6, -1, 7]}
    batch_x = [0, 1]
    batch_y = [2, 3]

    logp = gcn_alignment_cnn_forward(params, adj, batch_x, batch_y, doc_att, att_words,
                                     X=None, featureless=True)
    logp = jax.block_until_ready(logp)
    assert logp.shape == (len(batch_x), 2)
    assert bool(jnp.all(jnp.isfinite(logp)))
    assert bool(jnp.allclose(jnp.sum(jnp.exp(logp), axis=1), 1.0, atol=1e-4))

    print("KERNEL_OK")
</pallas_src>

<mosaic_0001>
module attributes {stable_mosaic.version = 11 : i64} {
  func.func @_matmul_single_k_kernel(%arg0: i32, %arg1: memref<128x256xf32, #tpu.memory_space<vmem>>, %arg2: memref<256x128xf32, #tpu.memory_space<vmem>>, %arg3: memref<128x128xf32, #tpu.memory_space<vmem>>) attributes {dimension_semantics = [#tpu.dimension_semantics<parallel>], iteration_bounds = array<i64: 2>, scalar_prefetch = 0 : i64, scratch_operands = 0 : i64, tpu.core_type = #tpu.core_type<tc>, window_params = [{transform_indices = @transform_0, window_bounds = array<i64: 128, 256>}, {pipeline_mode = #tpu.pipeline_mode<synchronous>, transform_indices = @transform_1, window_bounds = array<i64: 256, 128>}, {transform_indices = @transform_2, window_bounds = array<i64: 128, 128>}]} {
    %c0 = arith.constant 0 : index
    %c0_0 = arith.constant 0 : index
    %0 = vector.load %arg1[%c0, %c0_0] : memref<128x256xf32, #tpu.memory_space<vmem>>, vector<128x256xf32>
    %c0_1 = arith.constant 0 : index
    %c0_2 = arith.constant 0 : index
    %1 = vector.load %arg2[%c0_1, %c0_2] : memref<256x128xf32, #tpu.memory_space<vmem>>, vector<256x128xf32>
    %cst = arith.constant dense<0.000000e+00> : vector<128x128xf32>
    %2 = tpu.matmul %0, %1, %cst {dimension_numbers = #tpu.dot_dimension_numbers<[1], [0], [0], [1], [0, 0, 1, 1], [], []>} : vector<128x256xf32>, vector<256x128xf32>, vector<128x128xf32> -> vector<128x128xf32>
    %c0_3 = arith.constant 0 : index
    %c0_4 = arith.constant 0 : index
    %3 = vector.load %arg3[%c0_3, %c0_4] : memref<128x128xf32, #tpu.memory_space<vmem>>, vector<128x128xf32>
    tpu.vector_store %arg3[%c0_3, %c0_4], %2 {strides = array<i32>} : memref<128x128xf32, #tpu.memory_space<vmem>>, vector<128x128xf32>,
    return
  }
  func.func @transform_0(%arg0: i32) -> (i32, i32) {
    %c0_i32 = arith.constant 0 : i32
    %c0_i32_0 = arith.constant 0 : i32
    return %arg0, %c0_i32 : i32, i32
  }
  func.func @transform_1(%arg0: i32) -> (i32, i32) {
    %c0_i32 = arith.constant 0 : i32
    %c0_i32_0 = arith.constant 0 : i32
    %c0_i32_1 = arith.constant 0 : i32
    return %c0_i32, %c0_i32_0 : i32, i32
  }
  func.func @transform_2(%arg0: i32) -> (i32, i32) {
    %c0_i32 = arith.constant 0 : i32
    %c0_i32_0 = arith.constant 0 : i32
    return %arg0, %c0_i32 : i32, i32
  }
}

</mosaic_0001>

<llo_original>
// kernel: pallas_gcn_matmul.1
$region0: #{pallas_gcn_matmul.1}
  #allocation0 [shape = 'u32[]', space=smem, size = 0x4, offset = 0x4, fixed_abs, tag = 'smem constant byte address 0x4 - core index']
  #allocation1 [shape = 'u32[72,128]{1,0:T(1,128)}', space=vmem, size = 0x9000, scoped, tag = 'internal scratch']
  %s0 = inlined_call_operand.vmem [shape: f32[256,256], index: 0, kind: input, shape index: {}]
  %s1 = inlined_call_operand.vmem [shape: f32[256,128], index: 1, kind: input, shape index: {}]
  %s2 = inlined_call_operand.vmem [shape: f32[256,128], index: 2, kind: output, shape index: {}]
  %s3 = sld [smem:[#allocation0]]
  $region41: #{pallas_gcn_matmul.1} parent=0
    _
  %s5 = ssub.s32 1, %s3
  %s6 = scalar_select 0, %s5, %s3
  loop: start=0, step=1, limit=4
  $region2: #{pallas_gcn_matmul.1} parent=0 // loop_pre_header
    _
  $region3: #{pallas_gcn_matmul.1} parent=0 // loop_header
    %s8 = sphi 0, %s12
    %p9 = scmp.ge.s32.totalorder %s8, 4
    %s18 = sphi 0, %s20
    %s21 = sphi 0, %s18
    %s22 = sphi 0, %s21
    %s38 = sphi 0, %s22
    %s42 = sphi 0, %s42
    %s44 = sphi 0, %s42
    %s45 = sphi 0, %s44
    %s59 = sphi 0, %s45
    %s65 = sphi 0, %s67
    %s68 = sphi 0, %s65
    %s69 = sphi 0, %s68
    %s85 = sphi 0, %s69
  $region4: #{pallas_gcn_matmul.1} parent=0 // loop_header_branch
    %11 = sbr.rel (%p9) target = $region8
  $region5: #{pallas_gcn_matmul.1} parent=0 // loop_body
    %s13 = ssub.s32 %s8, 1
    %s14 = ssub.s32 %s8, 2
    %s15 = sadd.s32 %s8, 1
    %s16 = ssub.s32 %s8, %s15
    %p17 = scmp.eq.s32.totalorder %s16, 0
    %s19 = sadd.s32 %s18, 1
    %s20 = scalar_select %p17, %s18, %s19
    %p23 = pneg %p17
    %p24 = scmp.eq.s32.totalorder %s8, 1
    %p25 = por %p23, %p24
    %p26 = scmp.ne.s32.totalorder %s18, %s21
    %p27 = scmp.eq.s32.totalorder %s8, 0
    %p28 = por %p26, %p27
    %p29 = scmp.ne.s32.totalorder %s18, %s21
    %p30 = scmp.eq.s32.totalorder %s13, 1
    %p31 = por %p29, %p30
    %p32 = scmp.ne.s32.totalorder %s21, %s22
    %p33 = scmp.eq.s32.totalorder %s13, 0
    %p34 = por %p32, %p33
    %p35 = scmp.ne.s32.totalorder %s21, %s22
    %p36 = scmp.eq.s32.totalorder %s14, 1
    %p37 = por %p35, %p36
    %p39 = scmp.ne.s32.totalorder %s22, %s38
    %p40 = scmp.eq.s32.totalorder %s14, 0
    %p41 = por %p39, %p40
    %s43 = sadd.s32 %s42, 1
    %p46 = scmp.eq.s32.totalorder %s8, 1
    %p47 = scmp.ne.s32.totalorder %s42, %s44
    %p48 = scmp.eq.s32.totalorder %s8, 0
    %p49 = por %p47, %p48
    %p50 = scmp.ne.s32.totalorder %s42, %s44
    %p51 = scmp.eq.s32.totalorder %s13, 1
    %p52 = por %p50, %p51
    %p53 = scmp.ne.s32.totalorder %s44, %s45
    %p54 = scmp.eq.s32.totalorder %s13, 0
    %p55 = por %p53, %p54
    %p56 = scmp.ne.s32.totalorder %s44, %s45
    %p57 = scmp.eq.s32.totalorder %s14, 1
    %p58 = por %p56, %p57
    %p60 = scmp.ne.s32.totalorder %s45, %s59
    %p61 = scmp.eq.s32.totalorder %s14, 0
    %p62 = por %p60, %p61
    %s63 = ssub.s32 %s8, %s15
    %p64 = scmp.eq.s32.totalorder %s63, 0
    %s66 = sadd.s32 %s65, 1
    %s67 = scalar_select %p64, %s65, %s66
    %p70 = pneg %p64
    %p71 = scmp.eq.s32.totalorder %s8, 1
    %p72 = por %p70, %p71
    %p73 = scmp.ne.s32.totalorder %s65, %s68
    %p74 = scmp.eq.s32.totalorder %s8, 0
    %p75 = por %p73, %p74
    %p76 = scmp.ne.s32.totalorder %s65, %s68
    %p77 = scmp.eq.s32.totalorder %s13, 1
    %p78 = por %p76, %p77
    %p79 = scmp.ne.s32.totalorder %s68, %s69
    %p80 = scmp.eq.s32.totalorder %s13, 0
    %p81 = por %p79, %p80
    %p82 = scmp.ne.s32.totalorder %s68, %s69
    %p83 = scmp.eq.s32.totalorder %s14, 1
    %p84 = por %p82, %p83
    %p86 = scmp.ne.s32.totalorder %s69, %s85
    %p87 = scmp.eq.s32.totalorder %s14, 0
    %p88 = por %p86, %p87
    %p89 = scmp.le.s32.totalorder 1, %s8
    %p90 = scmp.lt.s32.totalorder %s8, 3
    %p91 = pnand %p89, %p90
    %p92 = pneg %p91
    // Predicated region
    $region9: #{pallas_gcn_matmul.1} parent=5 // pred_check
      _
    $region10: #{pallas_gcn_matmul.1} parent=5 // pred_check_branch
      %94 = sbr.rel (%p91) target = $region12
    $region11: #{pallas_gcn_matmul.1} parent=5 // pred_region
      %s95 = ssub.s32 %s8, 1
      // Predicated region
      $region13: #{pallas_gcn_matmul.1} parent=11 // pred_check
        %p96 = pneg %p55
      $region14: #{pallas_gcn_matmul.1} parent=11 // pred_check_branch
        %98 = sbr.rel (%p96) target = $region16
      $region15: #{pallas_gcn_matmul.1} parent=11 // pred_region
        _
      $region16: #{pallas_gcn_matmul.1} parent=11 // pred_fallthru
        _
    $region12: #{pallas_gcn_matmul.1} parent=5 // pred_fallthru
      _
    %p99 = scmp.lt.s32.totalorder %s8, 2
    // Predicated region
    $region17: #{pallas_gcn_matmul.1} parent=5 // pred_check
      %p100 = pneg %p99
    $region18: #{pallas_gcn_matmul.1} parent=5 // pred_check_branch
      %102 = sbr.rel (%p100) target = $region20
    $region19: #{pallas_gcn_matmul.1} parent=5 // pred_region
      // Predicated region
      $region21: #{pallas_gcn_matmul.1} parent=19 // pred_check
        %p103 = pneg %p28
      $region22: #{pallas_gcn_matmul.1} parent=19 // pred_check_branch
        %105 = sbr.rel (%p103) target = $region24
      $region23: #{pallas_gcn_matmul.1} parent=19 // pred_region
        %s106 = smul.u32 16, %s8
        %p107 = scmp.lt.s32.totalorder %s106, 31
        %s108 = scalar_select %p107, %s106, 31
        %s109 = smul.addr %s108, 2
        %s110 = smul.addr %s109, 8
        %s111 = scalar_lea.vmem %s0, %s110
        %s112 = smul.u32 16, %s8
      $region24: #{pallas_gcn_matmul.1} parent=19 // pred_fallthru
        _
    $region20: #{pallas_gcn_matmul.1} parent=5 // pred_fallthru
      _
    %p113 = scmp.le.s32.totalorder 1, %s8
    %p114 = scmp.lt.s32.totalorder %s8, 3
    %p115 = pnand %p113, %p114
    %p116 = pneg %p115
    // Predicated region
    $region25: #{pallas_gcn_matmul.1} parent=5 // pred_check
      _
    $region26: #{pallas_gcn_matmul.1} parent=5 // pred_check_branch
      %118 = sbr.rel (%p115) target = $region28
    $region27: #{pallas_gcn_matmul.1} parent=5 // pred_region
      %s119 = ssub.s32 %s8, 1
      %s120 = smul.u32 16, %s13
      %p121 = scmp.lt.s32.totalorder %s120, 31
      %s122 = scalar_select %p121, %s120, 31
      %s123 = smul.addr %s122, 2
      %s124 = smul.addr %s123, 8
      %s125 = scalar_lea.vmem %s0, %s124
      %p126 = pneg %p34
      %p127 = pneg %p31
      %p128 = pneg %p55
      %p129 = pneg %p52
      %p130 = pneg %p81
      %p131 = pneg %p78
      %s132 = smul.u32 16, %s13
      %p133 = scmp.lt.s32.totalorder %s132, 31
      %s134 = scalar_select %p133, %s132, 31
      %s135 = smul.addr %s134, 8
      %s136 = scalar_lea.vmem %s2, %s135
      %s137 = smul.u32 16, %s13
      %p138 = scmp.lt.s32.totalorder %s137, 31
      %s139 = scalar_select %p138, %s137, 31
      %s140 = smul.addr %s139, 2
      %s141 = smul.addr %s140, 8
      %s142 = scalar_lea.vmem %s0, %s141
      %s143 = smul.u32 16, %s13
      %s144 = smul.u32 16, %s13
      %p145 = scmp.lt.s32.totalorder %s144, 31
      %s146 = scalar_select %p145, %s144, 31
      %s147 = smul.addr %s146, 8
      %s148 = scalar_lea.vmem %s2, %s147
      %s149 = smul.u32 16, %s13
      %v150 = vld [vmem:[%s142] sm:$0xff]
      %v151 = vld [vmem:[%s142 + $0x8] sm:$0xff]
      %v152 = vld [vmem:[%s142 + $0x10] sm:$0xff]
      %v153 = vld [vmem:[%s142 + $0x18] sm:$0xff]
      %v154 = vld [vmem:[%s142 + $0x20] sm:$0xff]
      %v155 = vld [vmem:[%s142 + $0x28] sm:$0xff]
      %v156 = vld [vmem:[%s142 + $0x30] sm:$0xff]
      %v157 = vld [vmem:[%s142 + $0x38] sm:$0xff]
      %v158 = vld [vmem:[%s142 + $0x40] sm:$0xff]
      %v159 = vld [vmem:[%s142 + $0x48] sm:$0xff]
      %v160 = vld [vmem:[%s142 + $0x50] sm:$0xff]
      %v161 = vld [vmem:[%s142 + $0x58] sm:$0xff]
      %v162 = vld [vmem:[%s142 + $0x60] sm:$0xff]
      %v163 = vld [vmem:[%s142 + $0x68] sm:$0xff]
      %v164 = vld [vmem:[%s142 + $0x70] sm:$0xff]
      %v165 = vld [vmem:[%s142 + $0x78] sm:$0xff]
      %v166 = vld [vmem:[%s142 + $0x80] sm:$0xff]
      %v167 = vld [vmem:[%s142 + $0x88] sm:$0xff]
      %v168 = vld [vmem:[%s142 + $0x90] sm:$0xff]
      %v169 = vld [vmem:[%s142 + $0x98] sm:$0xff]
      %v170 = vld [vmem:[%s142 + $0xa0] sm:$0xff]
      %v171 = vld [vmem:[%s142 + $0xa8] sm:$0xff]
      %v172 = vld [vmem:[%s142 + $0xb0] sm:$0xff]
      %v173 = vld [vmem:[%s142 + $0xb8] sm:$0xff]
      %v174 = vld [vmem:[%s142 + $0xc0] sm:$0xff]
      %v175 = vld [vmem:[%s142 + $0xc8] sm:$0xff]
      %v176 = vld [vmem:[%s142 + $0xd0] sm:$0xff]
      %v177 = vld [vmem:[%s142 + $0xd8] sm:$0xff]
      %v178 = vld [vmem:[%s142 + $0xe0] sm:$0xff]
      %v179 = vld [vmem:[%s142 + $0xe8] sm:$0xff]
      %v180 = vld [vmem:[%s142 + $0xf0] sm:$0xff]
      %v181 = vld [vmem:[%s142 + $0xf8] sm:$0xff]
      %v182 = vld [vmem:[%s1] sm:$0xff]
      %v183 = vld [vmem:[%s1 + $0x8] sm:$0xff]
      %v184 = vld [vmem:[%s1 + $0x10] sm:$0xff]
      %v185 = vld [vmem:[%s1 + $0x18] sm:$0xff]
      %v186 = vld [vmem:[%s1 + $0x20] sm:$0xff]
      %v187 = vld [vmem:[%s1 + $0x28] sm:$0xff]
      %v188 = vld [vmem:[%s1 + $0x30] sm:$0xff]
      %v189 = vld [vmem:[%s1 + $0x38] sm:$0xff]
      %v190 = vld [vmem:[%s1 + $0x40] sm:$0xff]
      %v191 = vld [vmem:[%s1 + $0x48] sm:$0xff]
      %v192 = vld [vmem:[%s1 + $0x50] sm:$0xff]
      %v193 = vld [vmem:[%s1 + $0x58] sm:$0xff]
      %v194 = vld [vmem:[%s1 + $0x60] sm:$0xff]
      %v195 = vld [vmem:[%s1 + $0x68] sm:$0xff]
      %v196 = vld [vmem:[%s1 + $0x70] sm:$0xff]
      %v197 = vld [vmem:[%s1 + $0x78] sm:$0xff]
      %v198 = vld [vmem:[%s1 + $0x80] sm:$0xff]
      %v199 = vld [vmem:[%s1 + $0x88] sm:$0xff]
      %v200 = vld [vmem:[%s1 + $0x90] sm:$0xff]
      %v201 = vld [vmem:[%s1 + $0x98] sm:$0xff]
      %v202 = vld [vmem:[%s1 + $0xa0] sm:$0xff]
      %v203 = vld [vmem:[%s1 + $0xa8] sm:$0xff]
      %v204 = vld [vmem:[%s1 + $0xb0] sm:$0xff]
      %v205 = vld [vmem:[%s1 + $0xb8] sm:$0xff]
      %v206 = vld [vmem:[%s1 + $0xc0] sm:$0xff]
      %v207 = vld [vmem:[%s1 + $0xc8] sm:$0xff]
      %v208 = vld [vmem:[%s1 + $0xd0] sm:$0xff]
      %v209 = vld [vmem:[%s1 + $0xd8] sm:$0xff]
      %v210 = vld [vmem:[%s1 + $0xe0] sm:$0xff]
      %v211 = vld [vmem:[%s1 + $0xe8] sm:$0xff]
      %v212 = vld [vmem:[%s1 + $0xf0] sm:$0xff]
      %v213 = vld [vmem:[%s1 + $0xf8] sm:$0xff]
      %214 = vmatpush.msra.mxu0 %v197
      %215 = vmatpush.msra.mxu0 %v196
      %216 = vmatpush.msra.mxu0 %v195
      %217 = vmatpush.msra.mxu0 %v194
      %218 = vmatpush.msra.mxu0 %v193
      %219 = vmatpush.msra.mxu0 %v192
      %220 = vmatpush.msra.mxu0 %v191
      %221 = vmatpush.msra.mxu0 %v190
      %222 = vmatpush.msra.mxu0 %v189
      %223 = vmatpush.msra.mxu0 %v188
      %224 = vmatpush.msra.mxu0 %v187
      %225 = vmatpush.msra.mxu0 %v186
      %226 = vmatpush.msra.mxu0 %v185
      %227 = vmatpush.msra.mxu0 %v184
      %228 = vmatpush.msra.mxu0 %v183
      %229 = vmatpush.msra.mxu0 %v182
      %230 = vmatmul.f32.gmra.mxu0 %v150
      %v231 = vpop.f32.mrf.mxu0
      %v232 = vadd.f32 0.0, %v231
      %233 = vmatmul.f32.gmra.mxu0 %v152
      %v234 = vpop.f32.mrf.mxu0
      %v235 = vadd.f32 0.0, %v234
      %236 = vmatmul.f32.gmra.mxu0 %v154
      %v237 = vpop.f32.mrf.mxu0
      %v238 = vadd.f32 0.0, %v237
      %239 = vmatmul.f32.gmra.mxu0 %v156
      %v240 = vpop.f32.mrf.mxu0
      %v241 = vadd.f32 0.0, %v240
      %242 = vmatmul.f32.gmra.mxu0 %v158
      %v243 = vpop.f32.mrf.mxu0
      %v244 = vadd.f32 0.0, %v243
      %245 = vmatmul.f32.gmra.mxu0 %v160
      %v246 = vpop.f32.mrf.mxu0
      %v247 = vadd.f32 0.0, %v246
      %248 = vmatmul.f32.gmra.mxu0 %v162
      %v249 = vpop.f32.mrf.mxu0
      %v250 = vadd.f32 0.0, %v249
      %251 = vmatmul.f32.gmra.mxu0 %v164
      %v252 = vpop.f32.mrf.mxu0
      %v253 = vadd.f32 0.0, %v252
      %254 = vmatmul.f32.gmra.mxu0 %v166
      %v255 = vpop.f32.mrf.mxu0
      %v256 = vadd.f32 0.0, %v255
      %257 = vmatmul.f32.gmra.mxu0 %v168
      %v258 = vpop.f32.mrf.mxu0
      %v259 = vadd.f32 0.0, %v258
      %260 = vmatmul.f32.gmra.mxu0 %v170
      %v261 = vpop.f32.mrf.mxu0
      %v262 = vadd.f32 0.0, %v261
      %263 = vmatmul.f32.gmra.mxu0 %v172
      %v264 = vpop.f32.mrf.mxu0
      %v265 = vadd.f32 0.0, %v264
      %266 = vmatmul.f32.gmra.mxu0 %v174
      %v267 = vpop.f32.mrf.mxu0
      %v268 = vadd.f32 0.0, %v267
      %269 = vmatmul.f32.gmra.mxu0 %v176
      %v270 = vpop.f32.mrf.mxu0
      %v271 = vadd.f32 0.0, %v270
      %272 = vmatmul.f32.gmra.mxu0 %v178
      %v273 = vpop.f32.mrf.mxu0
      %v274 = vadd.f32 0.0, %v273
      %275 = vmatmul.f32.gmra.mxu0 %v180
      %v276 = vpop.f32.mrf.mxu0
      %v277 = vadd.f32 0.0, %v276
      %278 = vdwg.mxu0
      %279 = vmatpush.msra.mxu0 %v213
      %280 = vmatpush.msra.mxu0 %v212
      %281 = vmatpush.msra.mxu0 %v211
      %282 = vmatpush.msra.mxu0 %v210
      %283 = vmatpush.msra.mxu0 %v209
      %284 = vmatpush.msra.mxu0 %v208
      %285 = vmatpush.msra.mxu0 %v207
      %286 = vmatpush.msra.mxu0 %v206
      %287 = vmatpush.msra.mxu0 %v205
      %288 = vmatpush.msra.mxu0 %v204
      %289 = vmatpush.msra.mxu0 %v203
      %290 = vmatpush.msra.mxu0 %v202
      %291 = vmatpush.msra.mxu0 %v201
      %292 = vmatpush.msra.mxu0 %v200
      %293 = vmatpush.msra.mxu0 %v199
      %294 = vmatpush.msra.mxu0 %v198
      %295 = vmatmul.f32.gmra.mxu0 %v151
      %v296 = vpop.f32.mrf.mxu0
      %v297 = vadd.f32 %v232, %v296
      %298 = vmatmul.f32.gmra.mxu0 %v153
      %v299 = vpop.f32.mrf.mxu0
      %v300 = vadd.f32 %v235, %v299
      %301 = vmatmul.f32.gmra.mxu0 %v155
      %v302 = vpop.f32.mrf.mxu0
      %v303 = vadd.f32 %v238, %v302
      %304 = vmatmul.f32.gmra.mxu0 %v157
      %v305 = vpop.f32.mrf.mxu0
      %v306 = vadd.f32 %v241, %v305
      %307 = vmatmul.f32.gmra.mxu0 %v159
      %v308 = vpop.f32.mrf.mxu0
      %v309 = vadd.f32 %v244, %v308
      %310 = vmatmul.f32.gmra.mxu0 %v161
      %v311 = vpop.f32.mrf.mxu0
      %v312 = vadd.f32 %v247, %v311
      %313 = vmatmul.f32.gmra.mxu0 %v163
      %v314 = vpop.f32.mrf.mxu0
      %v315 = vadd.f32 %v250, %v314
      %316 = vmatmul.f32.gmra.mxu0 %v165
      %v317 = vpop.f32.mrf.mxu0
      %v318 = vadd.f32 %v253, %v317
      %319 = vmatmul.f32.gmra.mxu0 %v167
      %v320 = vpop.f32.mrf.mxu0
      %v321 = vadd.f32 %v256, %v320
      %322 = vmatmul.f32.gmra.mxu0 %v169
      %v323 = vpop.f32.mrf.mxu0
      %v324 = vadd.f32 %v259, %v323
      %325 = vmatmul.f32.gmra.mxu0 %v171
      %v326 = vpop.f32.mrf.mxu0
      %v327 = vadd.f32 %v262, %v326
      %328 = vmatmul.f32.gmra.mxu0 %v173
      %v329 = vpop.f32.mrf.mxu0
      %v330 = vadd.f32 %v265, %v329
      %331 = vmatmul.f32.gmra.mxu0 %v175
      %v332 = vpop.f32.mrf.mxu0
      %v333 = vadd.f32 %v268, %v332
      %334 = vmatmul.f32.gmra.mxu0 %v177
      %v335 = vpop.f32.mrf.mxu0
      %v336 = vadd.f32 %v271, %v335
      %337 = vmatmul.f32.gmra.mxu0 %v179
      %v338 = vpop.f32.mrf.mxu0
      %v339 = vadd.f32 %v274, %v338
      %340 = vmatmul.f32.gmra.mxu0 %v181
      %v341 = vpop.f32.mrf.mxu0
      %v342 = vadd.f32 %v277, %v341
      %343 = vdwg.mxu0
      %344 = vst [vmem:[%s148] sm:$0xff] %v297
      %345 = vst [vmem:[%s148 + $0x8] sm:$0xff] %v300
      %346 = vst [vmem:[%s148 + $0x10] sm:$0xff] %v303
      %347 = vst [vmem:[%s148 + $0x18] sm:$0xff] %v306
      %348 = vst [vmem:[%s148 + $0x20] sm:$0xff] %v309
      %349 = vst [vmem:[%s148 + $0x28] sm:$0xff] %v312
      %350 = vst [vmem:[%s148 + $0x30] sm:$0xff] %v315
      %351 = vst [vmem:[%s148 + $0x38] sm:$0xff] %v318
      %352 = vst [vmem:[%s148 + $0x40] sm:$0xff] %v321
      %353 = vst [vmem:[%s148 + $0x48] sm:$0xff] %v324
      %354 = vst [vmem:[%s148 + $0x50] sm:$0xff] %v327
      %355 = vst [vmem:[%s148 + $0x58] sm:$0xff] %v330
      %356 = vst [vmem:[%s148 + $0x60] sm:$0xff] %v333
      %357 = vst [vmem:[%s148 + $0x68] sm:$0xff] %v336
      %358 = vst [vmem:[%s148 + $0x70] sm:$0xff] %v339
      %359 = vst [vmem:[%s148 + $0x78] sm:$0xff] %v342
      %s360 = smul.u32 16, %s13
      %p361 = scmp.lt.s32.totalorder %s360, 31
      %s362 = scalar_select %p361, %s360, 31
      %s363 = smul.addr %s362, 8
      %s364 = scalar_lea.vmem %s2, %s363
      // Predicated region
      $region29: #{pallas_gcn_matmul.1} parent=27 // pred_check
        %p365 = pneg %p78
      $region30: #{pallas_gcn_matmul.1} parent=27 // pred_check_branch
        %367 = sbr.rel (%p365) target = $region32
      $region31: #{pallas_gcn_matmul.1} parent=27 // pred_region
        %s368 = smul.u32 16, %s13
      $region32: #{pallas_gcn_matmul.1} parent=27 // pred_fallthru
        _
    $region28: #{pallas_gcn_matmul.1} parent=5 // pred_fallthru
      _
    %p369 = scmp.le.s32.totalorder 2, %s8
    // Predicated region
    $region33: #{pallas_gcn_matmul.1} parent=5 // pred_check
      %p370 = pneg %p369
    $region34: #{pallas_gcn_matmul.1} parent=5 // pred_check_branch
      %372 = sbr.rel (%p370) target = $region36
    $region35: #{pallas_gcn_matmul.1} parent=5 // pred_region
      %s373 = ssub.s32 %s8, 2
      // Predicated region
      $region37: #{pallas_gcn_matmul.1} parent=35 // pred_check
        %p374 = pneg %p84
      $region38: #{pallas_gcn_matmul.1} parent=35 // pred_check_branch
        %376 = sbr.rel (%p374) target = $region40
      $region39: #{pallas_gcn_matmul.1} parent=35 // pred_region
        %s377 = smul.u32 16, %s14
        %p378 = scmp.lt.s32.totalorder %s377, 31
        %s379 = scalar_select %p378, %s377, 31
        %s380 = smul.addr %s379, 8
        %s381 = scalar_lea.vmem %s2, %s380
      $region40: #{pallas_gcn_matmul.1} parent=35 // pred_fallthru
        _
    $region36: #{pallas_gcn_matmul.1} parent=5 // pred_fallthru
      _
  $region6: #{pallas_gcn_matmul.1} parent=0 // loop_footer
    %s12 = sadd.s32 1, %s8
  $region7: #{pallas_gcn_matmul.1} parent=0 // loop_footer_branch
    %7 = sbr.rel target = $region3
  $region8: #{pallas_gcn_matmul.1} parent=0 // loop_exit
    _

</llo_original>
